<compile_context>
chip_gen: v6e
topology: v6e:2x2x1
jax: 0.10.0
libtpu: 0.0.40
codegen_flags: <defaults>
</compile_context>

<pallas_src>
import jax
import jax.numpy as jnp
from jax.experimental import pallas as pl
from jax.experimental.pallas import tpu as pltpu


def mlp_kernel(x_ref,
               w1_ref, b1_ref,
               w2_ref, b2_ref,
               w3_ref, b3_ref,
               w4_ref, b4_ref,
               w5_ref, b5_ref,
               o_ref):
    # x arrives in its native f32 layout (no padded HBM copy); the bf16
    # downcast rides a VPU slot under the MXU work.
    x = x_ref[...].astype(jnp.bfloat16)

    # Layer 1: Linear(in, 128) + ReLU   (bf16 MXU operands, f32 accumulate)
    h = jnp.dot(x, w1_ref[...], preferred_element_type=jnp.float32)
    h = jnp.maximum(h + b1_ref[...], 0.0)

    # Layer 2: Linear(128, 256) + ReLU
    h = jnp.dot(h.astype(jnp.bfloat16), w2_ref[...],
                preferred_element_type=jnp.float32)
    h = jnp.maximum(h + b2_ref[...], 0.0)

    # Layer 3: Linear(256, 256) + ReLU
    h = jnp.dot(h.astype(jnp.bfloat16), w3_ref[...],
                preferred_element_type=jnp.float32)
    h = jnp.maximum(h + b3_ref[...], 0.0)

    # Dropout(0.5): identity at inference time (model.eval()).
    # TODO(synk): training-mode dropout (pltpu.prng_seed + prng_random_bits mask).

    # Layer 4: Linear(256, 128) + ReLU
    h = jnp.dot(h.astype(jnp.bfloat16), w4_ref[...],
                preferred_element_type=jnp.float32)
    h = jnp.maximum(h + b4_ref[...], 0.0)

    # Layer 5: Linear(128, 1) + Sigmoid, emitted lane-dense as a (1, tb) row:
    #   (1,128) @ (tb,128)^T -> (1, tb)   (batch along lanes, unmasked stores)
    logits = jax.lax.dot_general(
        w5_ref[...], h.astype(jnp.bfloat16),
        dimension_numbers=(((1,), (1,)), ((), ())),
        preferred_element_type=jnp.float32)
    logits = logits + b5_ref[...]
    o_ref[...] = jax.nn.sigmoid(logits).astype(o_ref.dtype)


def _round_up(n, m):
    return ((n + m - 1) // m) * m


def _choose_batch_tile(B, tile_b):
    """Pick a batch tile: big (overhead-amortizing), multiple of 16, and giving
    >= 2 grid steps for reasonably large batches (megacore on v7x)."""
    n_tiles = max(1, -(-B // tile_b))        # ceil(B / tile_b)
    if n_tiles == 1 and B >= 512:
        n_tiles = 2                          # keep v7x's 2nd TensorCore busy
    tb = _round_up(-(-B // n_tiles), 16)
    return tb


def linear_model_forward(x, params, *, tile_b=2048):
    """x: (B, input_size) float32. params: list of 5 (W, b), W (in, out), b (1, out)."""
    B, in_size = x.shape
    (w1, b1), (w2, b2), (w3, b3), (w4, b4), (w5, b5) = params

    tb = _choose_batch_tile(B, tile_b)
    b_pad = _round_up(B, tb)

    # Only pad the batch remainder (no K-padding, no dtype-inflated copy of x).
    x_in = x if b_pad == B else jnp.pad(x, ((0, b_pad - B), (0, 0)))

    def as_bias(b, n):
        return jnp.reshape(jnp.asarray(b, jnp.float32), (1, n))

    flat = [
        jnp.asarray(w1, jnp.bfloat16),                  as_bias(b1, 128),
        jnp.asarray(w2, jnp.bfloat16),                  as_bias(b2, 256),
        jnp.asarray(w3, jnp.bfloat16),                  as_bias(b3, 256),
        jnp.asarray(w4, jnp.bfloat16),                  as_bias(b4, 128),
        jnp.asarray(w5, jnp.bfloat16).reshape(1, 128),  as_bias(b5, 1),
    ]

    grid = (b_pad // tb,)

    x_spec = pl.BlockSpec((tb, in_size), lambda i: (i, 0))
    # Lane-dense output: (1, b_pad) with batch along lanes.
    out_spec = pl.BlockSpec((1, tb), lambda i: (0, i))

    def resident(arr):
        # Full-array block + constant index_map: block index never changes, so
        # the weights/biases stay VMEM-resident (no re-DMA per grid step).
        return pl.BlockSpec(arr.shape, lambda i: (0, 0))

    in_specs = [x_spec] + [resident(a) for a in flat]

    flops = 2 * b_pad * (in_size * 128 + 128 * 256 + 256 * 256 + 256 * 128 + 128 * 1)
    bytes_accessed = (int(x_in.size) * x_in.dtype.itemsize
                      + b_pad * 4
                      + sum(int(a.size) * a.dtype.itemsize for a in flat))
    cost = pl.CostEstimate(flops=flops, transcendentals=b_pad,
                           bytes_accessed=bytes_accessed)

    out = pl.pallas_call(
        mlp_kernel,
        out_shape=jax.ShapeDtypeStruct((1, b_pad), jnp.float32),
        grid=grid,
        in_specs=in_specs,
        out_specs=out_spec,
        compiler_params=pltpu.CompilerParams(
            dimension_semantics=("parallel",),
            vmem_limit_bytes=32 * 1024 * 1024,
        ),
        cost_estimate=cost,
    )(x_in, *flat)

    # (1, b_pad) lane-dense row back to the module's (B, 1) column.
    return out[0, :B].reshape(B, 1)


def init_params(key, input_size):
    """Deterministic synthetic init (Kaiming-uniform-ish, like torch defaults)."""
    dims = [input_size, 128, 256, 256, 128, 1]
    params = []
    for i in range(len(dims) - 1):
        fan_in, fan_out = dims[i], dims[i + 1]
        key, kw, kb = jax.random.split(key, 3)
        bound = 1.0 / jnp.sqrt(fan_in)
        w = jax.random.uniform(kw, (fan_in, fan_out), jnp.float32, -bound, bound)
        b = jax.random.uniform(kb, (1, fan_out), jnp.float32, -bound, bound)
        params.append((w, b))
    return params


def reference_forward_f32(x, params):
    """Pure f32 reference (matches the PyTorch module's math; dropout=identity)."""
    h = x
    for i, (w, b) in enumerate(params):
        h = h @ w + b
        if i < len(params) - 1:
            h = jnp.maximum(h, 0.0)
    return jax.nn.sigmoid(h)


def reference_forward_mixed(x, params):
    """Mirrors the kernel's numerics: bf16 MXU operands, f32 accumulation."""
    h = x.astype(jnp.float32)
    n = len(params)
    for i, (w, b) in enumerate(params):
        b = jnp.reshape(jnp.asarray(b, jnp.float32), (1, -1))
        h = jnp.dot(h.astype(jnp.bfloat16), jnp.asarray(w, jnp.bfloat16),
                    preferred_element_type=jnp.float32) + b
        if i < n - 1:
            h = jnp.maximum(h, 0.0)
    return jax.nn.sigmoid(h)


if __name__ == "__main__":
    key = jax.random.PRNGKey(0)
    key, kx = jax.random.split(key)

    batch = 8
    input_size = 32
    x = jax.random.normal(kx, (batch, input_size), jnp.float32)

    params = init_params(key, input_size)

    out = linear_model_forward(x, params)
    out = jax.block_until_ready(out)
    assert out.shape == (batch, 1), out.shape

    # Tight check against a reference using the same mixed-precision recipe.
    ref_mixed = reference_forward_mixed(x, params)
    assert jnp.allclose(out, ref_mixed, atol=1e-3, rtol=1e-3), (out, ref_mixed)

    # Loose check against the pure-f32 (PyTorch-equivalent) math.
    ref_f32 = reference_forward_f32(x, params)
    assert jnp.allclose(out, ref_f32, atol=3e-2, rtol=3e-2), (out, ref_f32)

    print("KERNEL_OK")
</pallas_src>

<mosaic_0001>
module attributes {stable_mosaic.version = 11 : i64} {
  func.func @mlp_kernel(%arg0: i32, %arg1: memref<16x32xf32, #tpu.memory_space<vmem>>, %arg2: memref<32x128xbf16, #tpu.memory_space<vmem>>, %arg3: memref<1x128xf32, #tpu.memory_space<vmem>>, %arg4: memref<128x256xbf16, #tpu.memory_space<vmem>>, %arg5: memref<1x256xf32, #tpu.memory_space<vmem>>, %arg6: memref<256x256xbf16, #tpu.memory_space<vmem>>, %arg7: memref<1x256xf32, #tpu.memory_space<vmem>>, %arg8: memref<256x128xbf16, #tpu.memory_space<vmem>>, %arg9: memref<1x128xf32, #tpu.memory_space<vmem>>, %arg10: memref<1x128xbf16, #tpu.memory_space<vmem>>, %arg11: memref<1x1xf32, #tpu.memory_space<vmem>>, %arg12: memref<1x16xf32, #tpu.memory_space<vmem>>) attributes {dimension_semantics = [#tpu.dimension_semantics<parallel>], iteration_bounds = array<i64: 1>, scalar_prefetch = 0 : i64, scratch_operands = 0 : i64, tpu.core_type = #tpu.core_type<tc>, window_params = [{transform_indices = @transform_0, window_bounds = array<i64: 16, 32>}, {pipeline_mode = #tpu.pipeline_mode<synchronous>, transform_indices = @transform_1, window_bounds = array<i64: 32, 128>}, {pipeline_mode = #tpu.pipeline_mode<synchronous>, transform_indices = @transform_2, window_bounds = array<i64: 1, 128>}, {pipeline_mode = #tpu.pipeline_mode<synchronous>, transform_indices = @transform_3, window_bounds = array<i64: 128, 256>}, {pipeline_mode = #tpu.pipeline_mode<synchronous>, transform_indices = @transform_4, window_bounds = array<i64: 1, 256>}, {pipeline_mode = #tpu.pipeline_mode<synchronous>, transform_indices = @transform_5, window_bounds = array<i64: 256, 256>}, {pipeline_mode = #tpu.pipeline_mode<synchronous>, transform_indices = @transform_6, window_bounds = array<i64: 1, 256>}, {pipeline_mode = #tpu.pipeline_mode<synchronous>, transform_indices = @transform_7, window_bounds = array<i64: 256, 128>}, {pipeline_mode = #tpu.pipeline_mode<synchronous>, transform_indices = @transform_8, window_bounds = array<i64: 1, 128>}, {pipeline_mode = #tpu.pipeline_mode<synchronous>, transform_indices = @transform_9, window_bounds = array<i64: 1, 128>}, {pipeline_mode = #tpu.pipeline_mode<synchronous>, transform_indices = @transform_10, window_bounds = array<i64: 1, 1>}, {transform_indices = @transform_11, window_bounds = array<i64: 1, 16>}]} {
    %c0 = arith.constant 0 : index
    %c0_0 = arith.constant 0 : index
    %0 = vector.load %arg1[%c0, %c0_0] : memref<16x32xf32, #tpu.memory_space<vmem>>, vector<16x32xf32>
    %1 = arith.truncf %0 : vector<16x32xf32> to vector<16x32xbf16>
    %c0_1 = arith.constant 0 : index
    %c0_2 = arith.constant 0 : index
    %2 = vector.load %arg2[%c0_1, %c0_2] : memref<32x128xbf16, #tpu.memory_space<vmem>>, vector<32x128xbf16>
    %cst = arith.constant dense<0.000000e+00> : vector<16x128xf32>
    %3 = tpu.matmul %1, %2, %cst {dimension_numbers = #tpu.dot_dimension_numbers<[1], [0], [0], [1], [0, 0, 1, 1], [], []>} : vector<16x32xbf16>, vector<32x128xbf16>, vector<16x128xf32> -> vector<16x128xf32>
    %c0_3 = arith.constant 0 : index
    %c0_4 = arith.constant 0 : index
    %4 = vector.load %arg3[%c0_3, %c0_4] : memref<1x128xf32, #tpu.memory_space<vmem>>, vector<1x128xf32>
    %5 = vector.broadcast %4 : vector<1x128xf32> to vector<16x128xf32>
    %6 = arith.addf %3, %5 : vector<16x128xf32>
    %cst_5 = arith.constant 0.000000e+00 : f32
    %7 = vector.broadcast %cst_5 : f32 to vector<16x128xf32>
    %8 = arith.maximumf %6, %7 : vector<16x128xf32>
    %9 = arith.truncf %8 : vector<16x128xf32> to vector<16x128xbf16>
    %c0_6 = arith.constant 0 : index
    %c0_7 = arith.constant 0 : index
    %10 = vector.load %arg4[%c0_6, %c0_7] : memref<128x256xbf16, #tpu.memory_space<vmem>>, vector<128x256xbf16>
    %cst_8 = arith.constant dense<0.000000e+00> : vector<16x256xf32>
    %11 = tpu.matmul %9, %10, %cst_8 {dimension_numbers = #tpu.dot_dimension_numbers<[1], [0], [0], [1], [0, 0, 1, 1], [], []>} : vector<16x128xbf16>, vector<128x256xbf16>, vector<16x256xf32> -> vector<16x256xf32>
    %c0_9 = arith.constant 0 : index
    %c0_10 = arith.constant 0 : index
    %12 = vector.load %arg5[%c0_9, %c0_10] : memref<1x256xf32, #tpu.memory_space<vmem>>, vector<1x256xf32>
    %13 = vector.broadcast %12 : vector<1x256xf32> to vector<16x256xf32>
    %14 = arith.addf %11, %13 : vector<16x256xf32>
    %cst_11 = arith.constant 0.000000e+00 : f32
    %15 = vector.broadcast %cst_11 : f32 to vector<16x256xf32>
    %16 = arith.maximumf %14, %15 : vector<16x256xf32>
    %17 = arith.truncf %16 : vector<16x256xf32> to vector<16x256xbf16>
    %c0_12 = arith.constant 0 : index
    %c0_13 = arith.constant 0 : index
    %18 = vector.load %arg6[%c0_12, %c0_13] : memref<256x256xbf16, #tpu.memory_space<vmem>>, vector<256x256xbf16>
    %cst_14 = arith.constant dense<0.000000e+00> : vector<16x256xf32>
    %19 = tpu.matmul %17, %18, %cst_14 {dimension_numbers = #tpu.dot_dimension_numbers<[1], [0], [0], [1], [0, 0, 1, 1], [], []>} : vector<16x256xbf16>, vector<256x256xbf16>, vector<16x256xf32> -> vector<16x256xf32>
    %c0_15 = arith.constant 0 : index
    %c0_16 = arith.constant 0 : index
    %20 = vector.load %arg7[%c0_15, %c0_16] : memref<1x256xf32, #tpu.memory_space<vmem>>, vector<1x256xf32>
    %21 = vector.broadcast %20 : vector<1x256xf32> to vector<16x256xf32>
    %22 = arith.addf %19, %21 : vector<16x256xf32>
    %cst_17 = arith.constant 0.000000e+00 : f32
    %23 = vector.broadcast %cst_17 : f32 to vector<16x256xf32>
    %24 = arith.maximumf %22, %23 : vector<16x256xf32>
    %25 = arith.truncf %24 : vector<16x256xf32> to vector<16x256xbf16>
    %c0_18 = arith.constant 0 : index
    %c0_19 = arith.constant 0 : index
    %26 = vector.load %arg8[%c0_18, %c0_19] : memref<256x128xbf16, #tpu.memory_space<vmem>>, vector<256x128xbf16>
    %cst_20 = arith.constant dense<0.000000e+00> : vector<16x128xf32>
    %27 = tpu.matmul %25, %26, %cst_20 {dimension_numbers = #tpu.dot_dimension_numbers<[1], [0], [0], [1], [0, 0, 1, 1], [], []>} : vector<16x256xbf16>, vector<256x128xbf16>, vector<16x128xf32> -> vector<16x128xf32>
    %c0_21 = arith.constant 0 : index
    %c0_22 = arith.constant 0 : index
    %28 = vector.load %arg9[%c0_21, %c0_22] : memref<1x128xf32, #tpu.memory_space<vmem>>, vector<1x128xf32>
    %29 = vector.broadcast %28 : vector<1x128xf32> to vector<16x128xf32>
    %30 = arith.addf %27, %29 : vector<16x128xf32>
    %cst_23 = arith.constant 0.000000e+00 : f32
    %31 = vector.broadcast %cst_23 : f32 to vector<16x128xf32>
    %32 = arith.maximumf %30, %31 : vector<16x128xf32>
    %c0_24 = arith.constant 0 : index
    %c0_25 = arith.constant 0 : index
    %33 = vector.load %arg10[%c0_24, %c0_25] : memref<1x128xbf16, #tpu.memory_space<vmem>>, vector<1x128xbf16>
    %34 = arith.truncf %32 : vector<16x128xf32> to vector<16x128xbf16>
    %cst_26 = arith.constant dense<0.000000e+00> : vector<1x16xf32>
    %35 = tpu.matmul %33, %34, %cst_26 {dimension_numbers = #tpu.dot_dimension_numbers<[1], [1], [0], [0], [0, 0, 1, 0], [], []>} : vector<1x128xbf16>, vector<16x128xbf16>, vector<1x16xf32> -> vector<1x16xf32>
    %c0_27 = arith.constant 0 : index
    %c0_28 = arith.constant 0 : index
    %36 = vector.load %arg11[%c0_27, %c0_28] : memref<1x1xf32, #tpu.memory_space<vmem>>, vector<1x1xf32>
    %37 = vector.broadcast %36 : vector<1x1xf32> to vector<1x16xf32>
    %38 = arith.addf %35, %37 : vector<1x16xf32>
    %39 = arith.negf %38 : vector<1x16xf32>
    %40 = math.exp %39 : vector<1x16xf32>
    %cst_29 = arith.constant 1.000000e+00 : f32
    %41 = vector.broadcast %cst_29 : f32 to vector<1x16xf32>
    %42 = arith.addf %41, %40 : vector<1x16xf32>
    %43 = arith.divf %41, %42 : vector<1x16xf32>
    %c0_30 = arith.constant 0 : index
    %c0_31 = arith.constant 0 : index
    %44 = vector.load %arg12[%c0_30, %c0_31] : memref<1x16xf32, #tpu.memory_space<vmem>>, vector<1x16xf32>
    tpu.vector_store %arg12[%c0_30, %c0_31], %43 {strides = array<i32>} : memref<1x16xf32, #tpu.memory_space<vmem>>, vector<1x16xf32>,
    return
  }
  func.func @transform_0(%arg0: i32) -> (i32, i32) {
    %c0_i32 = arith.constant 0 : i32
    %c0_i32_0 = arith.constant 0 : i32
    return %arg0, %c0_i32 : i32, i32
  }
  func.func @transform_1(%arg0: i32) -> (i32, i32) {
    %c0_i32 = arith.constant 0 : i32
    %c0_i32_0 = arith.constant 0 : i32
    %c0_i32_1 = arith.constant 0 : i32
    return %c0_i32, %c0_i32_0 : i32, i32
  }
  func.func @transform_2(%arg0: i32) -> (i32, i32) {
    %c0_i32 = arith.constant 0 : i32
    %c0_i32_0 = arith.constant 0 : i32
    %c0_i32_1 = arith.constant 0 : i32
    return %c0_i32, %c0_i32_0 : i32, i32
  }
  func.func @transform_3(%arg0: i32) -> (i32, i32) {
    %c0_i32 = arith.constant 0 : i32
    %c0_i32_0 = arith.constant 0 : i32
    %c0_i32_1 = arith.constant 0 : i32
    return %c0_i32, %c0_i32_0 : i32, i32
  }
  func.func @transform_4(%arg0: i32) -> (i32, i32) {
    %c0_i32 = arith.constant 0 : i32
    %c0_i32_0 = arith.constant 0 : i32
    %c0_i32_1 = arith.constant 0 : i32
    return %c0_i32, %c0_i32_0 : i32, i32
  }
  func.func @transform_5(%arg0: i32) -> (i32, i32) {
    %c0_i32 = arith.constant 0 : i32
    %c0_i32_0 = arith.constant 0 : i32
    %c0_i32_1 = arith.constant 0 : i32
    return %c0_i32, %c0_i32_0 : i32, i32
  }
  func.func @transform_6(%arg0: i32) -> (i32, i32) {
    %c0_i32 = arith.constant 0 : i32
    %c0_i32_0 = arith.constant 0 : i32
    %c0_i32_1 = arith.constant 0 : i32
    return %c0_i32, %c0_i32_0 : i32, i32
  }
  func.func @transform_7(%arg0: i32) -> (i32, i32) {
    %c0_i32 = arith.constant 0 : i32
    %c0_i32_0 = arith.constant 0 : i32
    %c0_i32_1 = arith.constant 0 : i32
    return %c0_i32, %c0_i32_0 : i32, i32
  }
  func.func @transform_8(%arg0: i32) -> (i32, i32) {
    %c0_i32 = arith.constant 0 : i32
    %c0_i32_0 = arith.constant 0 : i32
    %c0_i32_1 = arith.constant 0 : i32
    return %c0_i32, %c0_i32_0 : i32, i32
  }
  func.func @transform_9(%arg0: i32) -> (i32, i32) {
    %c0_i32 = arith.constant 0 : i32
    %c0_i32_0 = arith.constant 0 : i32
    %c0_i32_1 = arith.constant 0 : i32
    return %c0_i32, %c0_i32_0 : i32, i32
  }
  func.func @transform_10(%arg0: i32) -> (i32, i32) {
    %c0_i32 = arith.constant 0 : i32
    %c0_i32_0 = arith.constant 0 : i32
    %c0_i32_1 = arith.constant 0 : i32
    return %c0_i32, %c0_i32_0 : i32, i32
  }
  func.func @transform_11(%arg0: i32) -> (i32, i32) {
    %c0_i32 = arith.constant 0 : i32
    %c0_i32_0 = arith.constant 0 : i32
    return %c0_i32, %arg0 : i32, i32
  }
}

</mosaic_0001>

<llo_original>
// kernel: tpu_custom_call.1
$region0: #{tpu_custom_call.1}
  #allocation0 [shape = 'u32[]', space=smem, size = 0x4, offset = 0x4, fixed_abs, tag = 'smem constant byte address 0x4 - core index']
  #allocation1 [shape = 'u32[144,128]{1,0:T(1,128)}', space=vmem, size = 0x12000, scoped, tag = 'internal scratch']
  #allocation2 [shape = 'f32[1,1]{1,0:T(1,128)S(1)}', space=vmem, size = 0x200, scoped, tag = 'scoped memory for tpu_custom_call.1']
  %s0 = inlined_call_operand.hbm [shape: f32[16,32], index: 0, kind: input, shape index: {}]
  %s1 = inlined_call_operand.hbm [shape: bf16[32,128], index: 1, kind: input, shape index: {}]
  %s2 = inlined_call_operand.vmem [shape: f32[1,128], index: 2, kind: input, shape index: {}]
  %s3 = inlined_call_operand.hbm [shape: bf16[128,256], index: 3, kind: input, shape index: {}]
  %s4 = inlined_call_operand.vmem [shape: f32[1,256], index: 4, kind: input, shape index: {}]
  %s5 = inlined_call_operand.hbm [shape: bf16[256,256], index: 5, kind: input, shape index: {}]
  %s6 = inlined_call_operand.vmem [shape: f32[1,256], index: 6, kind: input, shape index: {}]
  %s7 = inlined_call_operand.hbm [shape: bf16[256,128], index: 7, kind: input, shape index: {}]
  %s8 = inlined_call_operand.vmem [shape: f32[1,128], index: 8, kind: input, shape index: {}]
  %s9 = inlined_call_operand.vmem [shape: bf16[1,128], index: 9, kind: input, shape index: {}]
  %s10 = inlined_call_operand.<no memory space> [shape: f32[1,1], index: 10, kind: input, shape index: {}]
  %s11 = inlined_call_operand.hbm [shape: f32[1,16], index: 11, kind: output, shape index: {}]
  %s12 = sld [smem:[#allocation0]]
  $region74: #{tpu_custom_call.1} parent=0
    _
  %s14 = ssub.s32 1, %s12
  %s15 = scalar_select 0, %s14, %s12
  %v16 = vstv %s10
  %17 = vst [vmem:[#allocation2] sm:$0x1] %v16
  $region1: #{tpu_custom_call.1} parent=0
    #allocation3 [shape = 'u8[8192]{0}', space=vmem, size = 0x2000, scoped, tag = 'input window, operand 0, single buffered']
    #allocation4 [shape = 's32[1]{0}', space=sflag, size = 0x4, scoped, tag = 'scoped memory for tpu_custom_call.1']
    #allocation5 [shape = 's32[1]{0}', space=sflag, size = 0x4, scoped, tag = 'scoped memory for tpu_custom_call.1']
    #allocation6 [shape = 'u8[8192]{0}', space=vmem, size = 0x2000, scoped, tag = 'input window, operand 1, single buffered']
    #allocation7 [shape = 's32[1]{0}', space=sflag, size = 0x4, scoped, tag = 'scoped memory for tpu_custom_call.1']
    #allocation8 [shape = 'u8[65536]{0}', space=vmem, size = 0x10000, scoped, tag = 'input window, operand 3, single buffered']
    #allocation9 [shape = 'u8[131072]{0}', space=vmem, size = 0x20000, scoped, tag = 'input window, operand 5, single buffered']
    #allocation10 [shape = 's32[1]{0}', space=sflag, size = 0x4, scoped, tag = 'scoped memory for tpu_custom_call.1']
    #allocation11 [shape = 'u8[65536]{0}', space=vmem, size = 0x10000, scoped, tag = 'input window, operand 7, single buffered']
    #allocation12 [shape = 'u8[512]{0}', space=vmem, size = 0x400, scoped, tag = 'output window, operand 0, single buffered']
    %18 = vsyncpa [#allocation4], 0
    %19 = vsyncpa [#allocation7], 0
    %20 = vsyncpa [#allocation10], 0
    %21 = vsyncpa [#allocation5], 0
    // Predicated region
    $region2: #{tpu_custom_call.1} parent=1 // pred_check
      _
    $region3: #{tpu_custom_call.1} parent=1 // pred_check_branch
      %23 = sbr.rel (0) target = $region5
    $region4: #{tpu_custom_call.1} parent=1 // pred_region
      %s25 = ssub.s32 256, 256
      %26 = vsyncadd [#allocation4], %s25
      %s27 = sshll.u32 [#allocation3], 4
      %s28 = int_to_ptr.vmem [resolvable:$true] %s27
      %33 = dma.hbm_to_vmem [thread:$0]  %s0, 256, %s28, [#allocation4], 128, 128, 8
    $region5: #{tpu_custom_call.1} parent=1 // pred_fallthru
      _
    // Predicated region
    $region6: #{tpu_custom_call.1} parent=1 // pred_check
      _
    $region7: #{tpu_custom_call.1} parent=1 // pred_check_branch
      %35 = sbr.rel (0) target = $region9
    $region8: #{tpu_custom_call.1} parent=1 // pred_region
      %s37 = ssub.s32 256, 256
      %38 = vsyncadd [#allocation7], %s37
      %s39 = sshll.u32 [#allocation6], 4
      %s40 = int_to_ptr.vmem [resolvable:$true] %s39
      %45 = dma.hbm_to_vmem [thread:$0]  %s1, 256, %s40, [#allocation7], 64, 64, 4
    $region9: #{tpu_custom_call.1} parent=1 // pred_fallthru
      _
    // Predicated region
    $region10: #{tpu_custom_call.1} parent=1 // pred_check
      _
    $region11: #{tpu_custom_call.1} parent=1 // pred_check_branch
      %47 = sbr.rel (0) target = $region13
    $region12: #{tpu_custom_call.1} parent=1 // pred_region
      _
    $region13: #{tpu_custom_call.1} parent=1 // pred_fallthru
      _
    // Predicated region
    $region14: #{tpu_custom_call.1} parent=1 // pred_check
      _
    $region15: #{tpu_custom_call.1} parent=1 // pred_check_branch
      %49 = sbr.rel (0) target = $region17
    $region16: #{tpu_custom_call.1} parent=1 // pred_region
      %s51 = ssub.s32 2048, 2048
      %52 = vsyncadd [#allocation7], %s51
      %s53 = sshll.u32 [#allocation8], 4
      %s54 = int_to_ptr.vmem [resolvable:$true] %s53
      %59 = dma.hbm_to_vmem [thread:$0]  %s3, 2048, %s54, [#allocation7], 128, 128, 8
    $region17: #{tpu_custom_call.1} parent=1 // pred_fallthru
      _
    // Predicated region
    $region18: #{tpu_custom_call.1} parent=1 // pred_check
      _
    $region19: #{tpu_custom_call.1} parent=1 // pred_check_branch
      %61 = sbr.rel (0) target = $region21
    $region20: #{tpu_custom_call.1} parent=1 // pred_region
      _
    $region21: #{tpu_custom_call.1} parent=1 // pred_fallthru
      _
    // Predicated region
    $region22: #{tpu_custom_call.1} parent=1 // pred_check
      _
    $region23: #{tpu_custom_call.1} parent=1 // pred_check_branch
      %63 = sbr.rel (0) target = $region25
    $region24: #{tpu_custom_call.1} parent=1 // pred_region
      %s65 = ssub.s32 4096, 4096
      %66 = vsyncadd [#allocation10], %s65
      %s67 = sshll.u32 [#allocation9], 4
      %s68 = int_to_ptr.vmem [resolvable:$true] %s67
      %73 = dma.hbm_to_vmem [thread:$0]  %s5, 4096, %s68, [#allocation10], 128, 128, 8
    $region25: #{tpu_custom_call.1} parent=1 // pred_fallthru
      _
    // Predicated region
    $region26: #{tpu_custom_call.1} parent=1 // pred_check
      _
    $region27: #{tpu_custom_call.1} parent=1 // pred_check_branch
      %75 = sbr.rel (0) target = $region29
    $region28: #{tpu_custom_call.1} parent=1 // pred_region
      _
    $region29: #{tpu_custom_call.1} parent=1 // pred_fallthru
      _
    // Predicated region
    $region30: #{tpu_custom_call.1} parent=1 // pred_check
      _
    $region31: #{tpu_custom_call.1} parent=1 // pred_check_branch
      %77 = sbr.rel (0) target = $region33
    $region32: #{tpu_custom_call.1} parent=1 // pred_region
      %s79 = ssub.s32 2048, 2048
      %80 = vsyncadd [#allocation10], %s79
      %s81 = sshll.u32 [#allocation11], 4
      %s82 = int_to_ptr.vmem [resolvable:$true] %s81
      %87 = dma.hbm_to_vmem [thread:$0]  %s7, 2048, %s82, [#allocation10], 64, 64, 4
    $region33: #{tpu_custom_call.1} parent=1 // pred_fallthru
      _
    // Predicated region
    $region34: #{tpu_custom_call.1} parent=1 // pred_check
      _
    $region35: #{tpu_custom_call.1} parent=1 // pred_check_branch
      %89 = sbr.rel (0) target = $region37
    $region36: #{tpu_custom_call.1} parent=1 // pred_region
      _
    $region37: #{tpu_custom_call.1} parent=1 // pred_fallthru
      _
    // Predicated region
    $region38: #{tpu_custom_call.1} parent=1 // pred_check
      _
    $region39: #{tpu_custom_call.1} parent=1 // pred_check_branch
      %91 = sbr.rel (0) target = $region41
    $region40: #{tpu_custom_call.1} parent=1 // pred_region
      _
    $region41: #{tpu_custom_call.1} parent=1 // pred_fallthru
      _
    // Predicated region
    $region42: #{tpu_custom_call.1} parent=1 // pred_check
      _
    $region43: #{tpu_custom_call.1} parent=1 // pred_check_branch
      %93 = sbr.rel (0) target = $region45
    $region44: #{tpu_custom_call.1} parent=1 // pred_region
      _
    $region45: #{tpu_custom_call.1} parent=1 // pred_fallthru
      _
    // Predicated region
    $region46: #{tpu_custom_call.1} parent=1 // pred_check
      _
    $region47: #{tpu_custom_call.1} parent=1 // pred_check_branch
      %95 = sbr.rel (0) target = $region49
    $region48: #{tpu_custom_call.1} parent=1 // pred_region
      %96 = dma.done [#allocation4], 256
    $region49: #{tpu_custom_call.1} parent=1 // pred_fallthru
      _
    // Predicated region
    $region50: #{tpu_custom_call.1} parent=1 // pred_check
      _
    $region51: #{tpu_custom_call.1} parent=1 // pred_check_branch
      %98 = sbr.rel (0) target = $region53
    $region52: #{tpu_custom_call.1} parent=1 // pred_region
      %99 = dma.done [#allocation7], 256
    $region53: #{tpu_custom_call.1} parent=1 // pred_fallthru
      _
    // Predicated region
    $region54: #{tpu_custom_call.1} parent=1 // pred_check
      _
    $region55: #{tpu_custom_call.1} parent=1 // pred_check_branch
      %101 = sbr.rel (0) target = $region57
    $region56: #{tpu_custom_call.1} parent=1 // pred_region
      %102 = dma.done [#allocation7], 2048
    $region57: #{tpu_custom_call.1} parent=1 // pred_fallthru
      _
    // Predicated region
    $region58: #{tpu_custom_call.1} parent=1 // pred_check
      _
    $region59: #{tpu_custom_call.1} parent=1 // pred_check_branch
      %104 = sbr.rel (0) target = $region61
    $region60: #{tpu_custom_call.1} parent=1 // pred_region
      %105 = dma.done [#allocation10], 4096
    $region61: #{tpu_custom_call.1} parent=1 // pred_fallthru
      _
    // Predicated region
    $region62: #{tpu_custom_call.1} parent=1 // pred_check
      _
    $region63: #{tpu_custom_call.1} parent=1 // pred_check_branch
      %107 = sbr.rel (0) target = $region65
    $region64: #{tpu_custom_call.1} parent=1 // pred_region
      %108 = dma.done [#allocation10], 2048
    $region65: #{tpu_custom_call.1} parent=1 // pred_fallthru
      _
    %v110 = vld [vmem:[#allocation3] sm:$0xff]
    %v111 = vld [vmem:[#allocation3 + $0x8] sm:$0xff]
    %v112 = vpack.c.bf16 %v111, %v110
    %v113 = vld [vmem:[#allocation6] sm:$0xf]
    %v114 = vld [vmem:[#allocation6 + $0x4] sm:$0xf]
    %v115 = vld [vmem:[#allocation6 + $0x8] sm:$0xf]
    %v116 = vld [vmem:[#allocation6 + $0xc] sm:$0xf]
    %v117 = vld [vmem:[%s2] sm:$0x1]
    %v119 = vlaneseq
    %v120 = vshrl.u32 %v119, 7
    %v121 = vsub.s32 0, %v120
    %v122 = vrot.slane %v117, %v121
    %v128 = vunpack.c.l.b16 %v113
    %v129 = vunpack.c.l.b16 %v114
    %v130 = vunpack.c.l.b16 %v115
    %v131 = vunpack.c.l.b16 %v116
    %v132 = vpack.c.b16 %v129, %v128
    %v133 = vpack.c.b16 %v131, %v130
    %vm136 = vcmask 261120
    %v138 = vsel %vm136, %v112, 0
    %140 = vmatprep.subr.bf16.mxu0 0
    %141 = vmatpush1.bf16.msra.mxu0 0
    %142 = vmatprep.subr.bf16.mxu0 0
    %143 = vmatpush1.bf16.msra.mxu0 0
    %144 = vmatprep.subr.bf16.mxu0 0
    %145 = vmatpush1.bf16.msra.mxu0 0
    %146 = vmatprep.subr.bf16.mxu0 0
    %147 = vmatpush1.bf16.msra.mxu0 0
    %148 = vmatprep.subr.bf16.mxu0 0
    %149 = vmatpush1.bf16.msra.mxu0 0
    %150 = vmatprep.subr.bf16.mxu0 0
    %151 = vmatpush1.bf16.msra.mxu0 0
    %152 = vmatprep.subr.bf16.mxu0 0
    %153 = vmatpush1.bf16.msra.mxu0 %v133
    %154 = vmatprep.subr.bf16.mxu0 0
    %155 = vmatpush1.bf16.msra.mxu0 %v132
    %156 = vmatprep.subr.bf16.mxu0 0
    %157 = vmatpush2.bf16.msra.mxu0 0
    %158 = vmatprep.subr.bf16.mxu0 0
    %159 = vmatpush2.bf16.msra.mxu0 0
    %160 = vmatprep.subr.bf16.mxu0 0
    %161 = vmatpush2.bf16.msra.mxu0 0
    %162 = vmatprep.subr.bf16.mxu0 0
    %163 = vmatpush2.bf16.msra.mxu0 0
    %164 = vmatprep.subr.bf16.mxu0 0
    %165 = vmatpush2.bf16.msra.mxu0 0
    %166 = vmatprep.subr.bf16.mxu0 0
    %167 = vmatpush2.bf16.msra.mxu0 0
    %168 = vmatprep.subr.bf16.mxu0 0
    %169 = vmatpush2.bf16.msra.mxu0 0
    %170 = vmatprep.subr.bf16.mxu0 0
    %171 = vmatpush2.bf16.msra.mxu0 0
    %172 = vmatprep.mubr.bf16.mxu0 0
    %173 = vmatmul.mubr.bf16.gmra.mxu0 %v138
    %v174 = vpop.f32.mrf.mxu0
    %v175 = vadd.f32 %v122, %v174
    %v176 = vpop.f32.mrf.mxu0
    %v177 = vpop.f32.mrf.mxu0
    %v178 = vadd.f32 %v122, %v177
    %v179 = vpop.f32.mrf.mxu0
    %180 = vdwg.mxu0
    %v181 = vmax.f32 %v175, 0.0
    %v182 = vmax.f32 %v178, 0.0
    %v183 = vpack.c.bf16 %v182, %v181
    %v184 = vld [vmem:[#allocation8] sm:$0xff]
    %v185 = vld [vmem:[#allocation8 + $0x8] sm:$0xff]
    %v186 = vld [vmem:[#allocation8 + $0x10] sm:$0xff]
    %v187 = vld [vmem:[#allocation8 + $0x18] sm:$0xff]
    %v188 = vld [vmem:[#allocation8 + $0x20] sm:$0xff]
    %v189 = vld [vmem:[#allocation8 + $0x28] sm:$0xff]
    %v190 = vld [vmem:[#allocation8 + $0x30] sm:$0xff]
    %v191 = vld [vmem:[#allocation8 + $0x38] sm:$0xff]
    %v192 = vld [vmem:[#allocation8 + $0x40] sm:$0xff]
    %v193 = vld [vmem:[#allocation8 + $0x48] sm:$0xff]
    %v194 = vld [vmem:[#allocation8 + $0x50] sm:$0xff]
    %v195 = vld [vmem:[#allocation8 + $0x58] sm:$0xff]
    %v196 = vld [vmem:[#allocation8 + $0x60] sm:$0xff]
    %v197 = vld [vmem:[#allocation8 + $0x68] sm:$0xff]
    %v198 = vld [vmem:[#allocation8 + $0x70] sm:$0xff]
    %v199 = vld [vmem:[#allocation8 + $0x78] sm:$0xff]
    %v200 = vld [vmem:[%s4] sm:$0x3]
    %v202 = vlaneseq
    %v203 = vshrl.u32 %v202, 7
    %v204 = vsub.s32 0, %v203
    %v205 = vrot.slane %v200, %v204
    %v206 = vlaneseq
    %v207 = vshrl.u32 %v206, 7
    %v208 = vsub.s32 1, %v207
    %v209 = vrot.slane %v200, %v208
    %v228 = vunpack.c.l.b16 %v184
    %v229 = vunpack.c.h.b16 %v184
    %v230 = vunpack.c.l.b16 %v185
    %v231 = vunpack.c.h.b16 %v185
    %v232 = vunpack.c.l.b16 %v186
    %v233 = vunpack.c.h.b16 %v186
    %v234 = vunpack.c.l.b16 %v187
    %v235 = vunpack.c.h.b16 %v187
    %v236 = vunpack.c.l.b16 %v188
    %v237 = vunpack.c.h.b16 %v188
    %v238 = vunpack.c.l.b16 %v189
    %v239 = vunpack.c.h.b16 %v189
    %v240 = vunpack.c.l.b16 %v190
    %v241 = vunpack.c.h.b16 %v190
    %v242 = vunpack.c.l.b16 %v191
    %v243 = vunpack.c.h.b16 %v191
    %v244 = vunpack.c.l.b16 %v192
    %v245 = vunpack.c.h.b16 %v192
    %v246 = vunpack.c.l.b16 %v193
    %v247 = vunpack.c.h.b16 %v193
    %v248 = vunpack.c.l.b16 %v194
    %v249 = vunpack.c.h.b16 %v194
    %v250 = vunpack.c.l.b16 %v195
    %v251 = vunpack.c.h.b16 %v195
    %v252 = vunpack.c.l.b16 %v196
    %v253 = vunpack.c.h.b16 %v196
    %v254 = vunpack.c.l.b16 %v197
    %v255 = vunpack.c.h.b16 %v197
    %v256 = vunpack.c.l.b16 %v198
    %v257 = vunpack.c.h.b16 %v198
    %v258 = vunpack.c.l.b16 %v199
    %v259 = vunpack.c.h.b16 %v199
    %v260 = vpack.c.b16 %v230, %v228
    %v261 = vpack.c.b16 %v231, %v229
    %v262 = vpack.c.b16 %v234, %v232
    %v263 = vpack.c.b16 %v235, %v233
    %v264 = vpack.c.b16 %v238, %v236
    %v265 = vpack.c.b16 %v239, %v237
    %v266 = vpack.c.b16 %v242, %v240
    %v267 = vpack.c.b16 %v243, %v241
    %v268 = vpack.c.b16 %v246, %v244
    %v269 = vpack.c.b16 %v247, %v245
    %v270 = vpack.c.b16 %v250, %v248
    %v271 = vpack.c.b16 %v251, %v249
    %v272 = vpack.c.b16 %v254, %v252
    %v273 = vpack.c.b16 %v255, %v253
    %v274 = vpack.c.b16 %v258, %v256
    %v275 = vpack.c.b16 %v259, %v257
    %292 = vmatprep.subr.bf16.mxu0 %v275
    %293 = vmatpush1.bf16.msra.mxu0 %v274
    %294 = vmatprep.subr.bf16.mxu0 %v273
    %295 = vmatpush1.bf16.msra.mxu0 %v272
    %296 = vmatprep.subr.bf16.mxu0 %v271
    %297 = vmatpush1.bf16.msra.mxu0 %v270
    %298 = vmatprep.subr.bf16.mxu0 %v269
    %299 = vmatpush1.bf16.msra.mxu0 %v268
    %300 = vmatprep.subr.bf16.mxu0 %v267
    %301 = vmatpush1.bf16.msra.mxu0 %v266
    %302 = vmatprep.subr.bf16.mxu0 %v265
    %303 = vmatpush1.bf16.msra.mxu0 %v264
    %304 = vmatprep.subr.bf16.mxu0 %v263
    %305 = vmatpush1.bf16.msra.mxu0 %v262
    %306 = vmatprep.subr.bf16.mxu0 %v261
    %307 = vmatpush1.bf16.msra.mxu0 %v260
    %308 = vmatprep.subr.bf16.mxu0 0
    %309 = vmatpush2.bf16.msra.mxu0 0
    %310 = vmatprep.subr.bf16.mxu0 0
    %311 = vmatpush2.bf16.msra.mxu0 0
    %312 = vmatprep.subr.bf16.mxu0 0
    %313 = vmatpush2.bf16.msra.mxu0 0
    %314 = vmatprep.subr.bf16.mxu0 0
    %315 = vmatpush2.bf16.msra.mxu0 0
    %316 = vmatprep.subr.bf16.mxu0 0
    %317 = vmatpush2.bf16.msra.mxu0 0
    %318 = vmatprep.subr.bf16.mxu0 0
    %319 = vmatpush2.bf16.msra.mxu0 0
    %320 = vmatprep.subr.bf16.mxu0 0
    %321 = vmatpush2.bf16.msra.mxu0 0
    %322 = vmatprep.subr.bf16.mxu0 0
    %323 = vmatpush2.bf16.msra.mxu0 0
    %324 = vmatprep.mubr.bf16.mxu0 0
    %325 = vmatmul.mubr.bf16.gmra.mxu0 %v183
    %v326 = vpop.f32.mrf.mxu0
    %v327 = vadd.f32 %v205, %v326
    %v328 = vpop.f32.mrf.mxu0
    %v329 = vadd.f32 %v209, %v328
    %v330 = vpop.f32.mrf.mxu0
    %v331 = vadd.f32 %v205, %v330
    %v332 = vpop.f32.mrf.mxu0
    %v333 = vadd.f32 %v209, %v332
    %334 = vdwg.mxu0
    %v335 = vmax.f32 %v327, 0.0
    %v336 = vmax.f32 %v329, 0.0
    %v337 = vmax.f32 %v331, 0.0
    %v338 = vmax.f32 %v333, 0.0
    %v339 = vpack.c.bf16 %v337, %v335
    %v340 = vpack.c.bf16 %v338, %v336
    %v341 = vld [vmem:[#allocation9] sm:$0xff]
    %v342 = vld [vmem:[#allocation9 + $0x8] sm:$0xff]
    %v343 = vld [vmem:[#allocation9 + $0x10] sm:$0xff]
    %v344 = vld [vmem:[#allocation9 + $0x18] sm:$0xff]
    %v345 = vld [vmem:[#allocation9 + $0x20] sm:$0xff]
    %v346 = vld [vmem:[#allocation9 + $0x28] sm:$0xff]
    %v347 = vld [vmem:[#allocation9 + $0x30] sm:$0xff]
    %v348 = vld [vmem:[#allocation9 + $0x38] sm:$0xff]
    %v349 = vld [vmem:[#allocation9 + $0x40] sm:$0xff]
    %v350 = vld [vmem:[#allocation9 + $0x48] sm:$0xff]
    %v351 = vld [vmem:[#allocation9 + $0x50] sm:$0xff]
    %v352 = vld [vmem:[#allocation9 + $0x58] sm:$0xff]
    %v353 = vld [vmem:[#allocation9 + $0x60] sm:$0xff]
    %v354 = vld [vmem:[#allocation9 + $0x68] sm:$0xff]
    %v355 = vld [vmem:[#allocation9 + $0x70] sm:$0xff]
    %v356 = vld [vmem:[#allocation9 + $0x78] sm:$0xff]
    %v357 = vld [vmem:[#allocation9 + $0x80] sm:$0xff]
    %v358 = vld [vmem:[#allocation9 + $0x88] sm:$0xff]
    %v359 = vld [vmem:[#allocation9 + $0x90] sm:$0xff]
    %v360 = vld [vmem:[#allocation9 + $0x98] sm:$0xff]
    %v361 = vld [vmem:[#allocation9 + $0xa0] sm:$0xff]
    %v362 = vld [vmem:[#allocation9 + $0xa8] sm:$0xff]
    %v363 = vld [vmem:[#allocation9 + $0xb0] sm:$0xff]
    %v364 = vld [vmem:[#allocation9 + $0xb8] sm:$0xff]
    %v365 = vld [vmem:[#allocation9 + $0xc0] sm:$0xff]
    %v366 = vld [vmem:[#allocation9 + $0xc8] sm:$0xff]
    %v367 = vld [vmem:[#allocation9 + $0xd0] sm:$0xff]
    %v368 = vld [vmem:[#allocation9 + $0xd8] sm:$0xff]
    %v369 = vld [vmem:[#allocation9 + $0xe0] sm:$0xff]
    %v370 = vld [vmem:[#allocation9 + $0xe8] sm:$0xff]
    %v371 = vld [vmem:[#allocation9 + $0xf0] sm:$0xff]
    %v372 = vld [vmem:[#allocation9 + $0xf8] sm:$0xff]
    %v373 = vld [vmem:[%s6] sm:$0x3]
    %v375 = vlaneseq
    %v376 = vshrl.u32 %v375, 7
    %v377 = vsub.s32 0, %v376
    %v378 = vrot.slane %v373, %v377
    %v379 = vlaneseq
    %v380 = vshrl.u32 %v379, 7
    %v381 = vsub.s32 1, %v380
    %v382 = vrot.slane %v373, %v381
    %v417 = vunpack.c.l.b16 %v341
    %v418 = vunpack.c.h.b16 %v341
    %v419 = vunpack.c.l.b16 %v342
    %v420 = vunpack.c.h.b16 %v342
    %v421 = vunpack.c.l.b16 %v343
    %v422 = vunpack.c.h.b16 %v343
    %v423 = vunpack.c.l.b16 %v344
    %v424 = vunpack.c.h.b16 %v344
    %v425 = vunpack.c.l.b16 %v345
    %v426 = vunpack.c.h.b16 %v345
    %v427 = vunpack.c.l.b16 %v346
    %v428 = vunpack.c.h.b16 %v346
    %v429 = vunpack.c.l.b16 %v347
    %v430 = vunpack.c.h.b16 %v347
    %v431 = vunpack.c.l.b16 %v348
    %v432 = vunpack.c.h.b16 %v348
    %v433 = vunpack.c.l.b16 %v349
    %v434 = vunpack.c.h.b16 %v349
    %v435 = vunpack.c.l.b16 %v350
    %v436 = vunpack.c.h.b16 %v350
    %v437 = vunpack.c.l.b16 %v351
    %v438 = vunpack.c.h.b16 %v351
    %v439 = vunpack.c.l.b16 %v352
    %v440 = vunpack.c.h.b16 %v352
    %v441 = vunpack.c.l.b16 %v353
    %v442 = vunpack.c.h.b16 %v353
    %v443 = vunpack.c.l.b16 %v354
    %v444 = vunpack.c.h.b16 %v354
    %v445 = vunpack.c.l.b16 %v355
    %v446 = vunpack.c.h.b16 %v355
    %v447 = vunpack.c.l.b16 %v356
    %v448 = vunpack.c.h.b16 %v356
    %v449 = vunpack.c.l.b16 %v357
    %v450 = vunpack.c.h.b16 %v357
    %v451 = vunpack.c.l.b16 %v358
    %v452 = vunpack.c.h.b16 %v358
    %v453 = vunpack.c.l.b16 %v359
    %v454 = vunpack.c.h.b16 %v359
    %v455 = vunpack.c.l.b16 %v360
    %v456 = vunpack.c.h.b16 %v360
    %v457 = vunpack.c.l.b16 %v361
    %v458 = vunpack.c.h.b16 %v361
    %v459 = vunpack.c.l.b16 %v362
    %v460 = vunpack.c.h.b16 %v362
    %v461 = vunpack.c.l.b16 %v363
    %v462 = vunpack.c.h.b16 %v363
    %v463 = vunpack.c.l.b16 %v364
    %v464 = vunpack.c.h.b16 %v364
    %v465 = vunpack.c.l.b16 %v365
    %v466 = vunpack.c.h.b16 %v365
    %v467 = vunpack.c.l.b16 %v366
    %v468 = vunpack.c.h.b16 %v366
    %v469 = vunpack.c.l.b16 %v367
    %v470 = vunpack.c.h.b16 %v367
    %v471 = vunpack.c.l.b16 %v368
    %v472 = vunpack.c.h.b16 %v368
    %v473 = vunpack.c.l.b16 %v369
    %v474 = vunpack.c.h.b16 %v369
    %v475 = vunpack.c.l.b16 %v370
    %v476 = vunpack.c.h.b16 %v370
    %v477 = vunpack.c.l.b16 %v371
    %v478 = vunpack.c.h.b16 %v371
    %v479 = vunpack.c.l.b16 %v372
    %v480 = vunpack.c.h.b16 %v372
    %v481 = vpack.c.b16 %v419, %v417
    %v482 = vpack.c.b16 %v420, %v418
    %v483 = vpack.c.b16 %v423, %v421
    %v484 = vpack.c.b16 %v424, %v422
    %v485 = vpack.c.b16 %v427, %v425
    %v486 = vpack.c.b16 %v428, %v426
    %v487 = vpack.c.b16 %v431, %v429
    %v488 = vpack.c.b16 %v432, %v430
    %v489 = vpack.c.b16 %v435, %v433
    %v490 = vpack.c.b16 %v436, %v434
    %v491 = vpack.c.b16 %v439, %v437
    %v492 = vpack.c.b16 %v440, %v438
    %v493 = vpack.c.b16 %v443, %v441
    %v494 = vpack.c.b16 %v444, %v442
    %v495 = vpack.c.b16 %v447, %v445
    %v496 = vpack.c.b16 %v448, %v446
    %v497 = vpack.c.b16 %v451, %v449
    %v498 = vpack.c.b16 %v452, %v450
    %v499 = vpack.c.b16 %v455, %v453
    %v500 = vpack.c.b16 %v456, %v454
    %v501 = vpack.c.b16 %v459, %v457
    %v502 = vpack.c.b16 %v460, %v458
    %v503 = vpack.c.b16 %v463, %v461
    %v504 = vpack.c.b16 %v464, %v462
    %v505 = vpack.c.b16 %v467, %v465
    %v506 = vpack.c.b16 %v468, %v466
    %v507 = vpack.c.b16 %v471, %v469
    %v508 = vpack.c.b16 %v472, %v470
    %v509 = vpack.c.b16 %v475, %v473
    %v510 = vpack.c.b16 %v476, %v474
    %v511 = vpack.c.b16 %v479, %v477
    %v512 = vpack.c.b16 %v480, %v478
    %545 = vmatprep.subr.bf16.mxu0 %v496
    %546 = vmatpush1.bf16.msra.mxu0 %v495
    %547 = vmatprep.subr.bf16.mxu0 %v494
    %548 = vmatpush1.bf16.msra.mxu0 %v493
    %549 = vmatprep.subr.bf16.mxu0 %v492
    %550 = vmatpush1.bf16.msra.mxu0 %v491
    %551 = vmatprep.subr.bf16.mxu0 %v490
    %552 = vmatpush1.bf16.msra.mxu0 %v489
    %553 = vmatprep.subr.bf16.mxu0 %v488
    %554 = vmatpush1.bf16.msra.mxu0 %v487
    %555 = vmatprep.subr.bf16.mxu0 %v486
    %556 = vmatpush1.bf16.msra.mxu0 %v485
    %557 = vmatprep.subr.bf16.mxu0 %v484
    %558 = vmatpush1.bf16.msra.mxu0 %v483
    %559 = vmatprep.subr.bf16.mxu0 %v482
    %560 = vmatpush1.bf16.msra.mxu0 %v481
    %561 = vmatprep.subr.bf16.mxu0 %v512
    %562 = vmatpush2.bf16.msra.mxu0 %v511
    %563 = vmatprep.subr.bf16.mxu0 %v510
    %564 = vmatpush2.bf16.msra.mxu0 %v509
    %565 = vmatprep.subr.bf16.mxu0 %v508
    %566 = vmatpush2.bf16.msra.mxu0 %v507
    %567 = vmatprep.subr.bf16.mxu0 %v506
    %568 = vmatpush2.bf16.msra.mxu0 %v505
    %569 = vmatprep.subr.bf16.mxu0 %v504
    %570 = vmatpush2.bf16.msra.mxu0 %v503
    %571 = vmatprep.subr.bf16.mxu0 %v502
    %572 = vmatpush2.bf16.msra.mxu0 %v501
    %573 = vmatprep.subr.bf16.mxu0 %v500
    %574 = vmatpush2.bf16.msra.mxu0 %v499
    %575 = vmatprep.subr.bf16.mxu0 %v498
    %576 = vmatpush2.bf16.msra.mxu0 %v497
    %577 = vmatprep.mubr.bf16.mxu0 %v340
    %578 = vmatmul.mubr.bf16.gmra.mxu0 %v339
    %v579 = vpop.f32.mrf.mxu0
    %v580 = vadd.f32 %v378, %v579
    %v581 = vpop.f32.mrf.mxu0
    %v582 = vadd.f32 %v382, %v581
    %v583 = vpop.f32.mrf.mxu0
    %v584 = vadd.f32 %v378, %v583
    %v585 = vpop.f32.mrf.mxu0
    %v586 = vadd.f32 %v382, %v585
    %587 = vdwg.mxu0
    %v588 = vmax.f32 %v580, 0.0
    %v589 = vmax.f32 %v582, 0.0
    %v590 = vmax.f32 %v584, 0.0
    %v591 = vmax.f32 %v586, 0.0
    %v592 = vpack.c.bf16 %v590, %v588
    %v593 = vpack.c.bf16 %v591, %v589
    %v594 = vld [vmem:[#allocation11] sm:$0xf]
    %v595 = vld [vmem:[#allocation11 + $0x4] sm:$0xf]
    %v596 = vld [vmem:[#allocation11 + $0x8] sm:$0xf]
    %v597 = vld [vmem:[#allocation11 + $0xc] sm:$0xf]
    %v598 = vld [vmem:[#allocation11 + $0x10] sm:$0xf]
    %v599 = vld [vmem:[#allocation11 + $0x14] sm:$0xf]
    %v600 = vld [vmem:[#allocation11 + $0x18] sm:$0xf]
    %v601 = vld [vmem:[#allocation11 + $0x1c] sm:$0xf]
    %v602 = vld [vmem:[#allocation11 + $0x20] sm:$0xf]
    %v603 = vld [vmem:[#allocation11 + $0x24] sm:$0xf]
    %v604 = vld [vmem:[#allocation11 + $0x28] sm:$0xf]
    %v605 = vld [vmem:[#allocation11 + $0x2c] sm:$0xf]
    %v606 = vld [vmem:[#allocation11 + $0x30] sm:$0xf]
    %v607 = vld [vmem:[#allocation11 + $0x34] sm:$0xf]
    %v608 = vld [vmem:[#allocation11 + $0x38] sm:$0xf]
    %v609 = vld [vmem:[#allocation11 + $0x3c] sm:$0xf]
    %v610 = vld [vmem:[#allocation11 + $0x40] sm:$0xf]
    %v611 = vld [vmem:[#allocation11 + $0x44] sm:$0xf]
    %v612 = vld [vmem:[#allocation11 + $0x48] sm:$0xf]
    %v613 = vld [vmem:[#allocation11 + $0x4c] sm:$0xf]
    %v614 = vld [vmem:[#allocation11 + $0x50] sm:$0xf]
    %v615 = vld [vmem:[#allocation11 + $0x54] sm:$0xf]
    %v616 = vld [vmem:[#allocation11 + $0x58] sm:$0xf]
    %v617 = vld [vmem:[#allocation11 + $0x5c] sm:$0xf]
    %v618 = vld [vmem:[#allocation11 + $0x60] sm:$0xf]
    %v619 = vld [vmem:[#allocation11 + $0x64] sm:$0xf]
    %v620 = vld [vmem:[#allocation11 + $0x68] sm:$0xf]
    %v621 = vld [vmem:[#allocation11 + $0x6c] sm:$0xf]
    %v622 = vld [vmem:[#allocation11 + $0x70] sm:$0xf]
    %v623 = vld [vmem:[#allocation11 + $0x74] sm:$0xf]
    %v624 = vld [vmem:[#allocation11 + $0x78] sm:$0xf]
    %v625 = vld [vmem:[#allocation11 + $0x7c] sm:$0xf]
    %v626 = vld [vmem:[%s8] sm:$0x1]
    %v628 = vlaneseq
    %v629 = vshrl.u32 %v628, 7
    %v630 = vsub.s32 0, %v629
    %v631 = vrot.slane %v626, %v630
    %v665 = vunpack.c.l.b16 %v594
    %v666 = vunpack.c.l.b16 %v595
    %v667 = vunpack.c.l.b16 %v596
    %v668 = vunpack.c.l.b16 %v597
    %v669 = vunpack.c.l.b16 %v598
    %v670 = vunpack.c.l.b16 %v599
    %v671 = vunpack.c.l.b16 %v600
    %v672 = vunpack.c.l.b16 %v601
    %v673 = vunpack.c.l.b16 %v602
    %v674 = vunpack.c.l.b16 %v603
    %v675 = vunpack.c.l.b16 %v604
    %v676 = vunpack.c.l.b16 %v605
    %v677 = vunpack.c.l.b16 %v606
    %v678 = vunpack.c.l.b16 %v607
    %v679 = vunpack.c.l.b16 %v608
    %v680 = vunpack.c.l.b16 %v609
    %v681 = vunpack.c.l.b16 %v610
    %v682 = vunpack.c.l.b16 %v611
    %v683 = vunpack.c.l.b16 %v612
    %v684 = vunpack.c.l.b16 %v613
    %v685 = vunpack.c.l.b16 %v614
    %v686 = vunpack.c.l.b16 %v615
    %v687 = vunpack.c.l.b16 %v616
    %v688 = vunpack.c.l.b16 %v617
    %v689 = vunpack.c.l.b16 %v618
    %v690 = vunpack.c.l.b16 %v619
    %v691 = vunpack.c.l.b16 %v620
    %v692 = vunpack.c.l.b16 %v621
    %v693 = vunpack.c.l.b16 %v622
    %v694 = vunpack.c.l.b16 %v623
    %v695 = vunpack.c.l.b16 %v624
    %v696 = vunpack.c.l.b16 %v625
    %v697 = vpack.c.b16 %v666, %v665
    %v698 = vpack.c.b16 %v668, %v667
    %v699 = vpack.c.b16 %v670, %v669
    %v700 = vpack.c.b16 %v672, %v671
    %v701 = vpack.c.b16 %v674, %v673
    %v702 = vpack.c.b16 %v676, %v675
    %v703 = vpack.c.b16 %v678, %v677
    %v704 = vpack.c.b16 %v680, %v679
    %v705 = vpack.c.b16 %v682, %v681
    %v706 = vpack.c.b16 %v684, %v683
    %v707 = vpack.c.b16 %v686, %v685
    %v708 = vpack.c.b16 %v688, %v687
    %v709 = vpack.c.b16 %v690, %v689
    %v710 = vpack.c.b16 %v692, %v691
    %v711 = vpack.c.b16 %v694, %v693
    %v712 = vpack.c.b16 %v696, %v695
    %729 = vmatprep.subr.bf16.mxu0 0
    %730 = vmatpush1.bf16.msra.mxu0 %v704
    %731 = vmatprep.subr.bf16.mxu0 0
    %732 = vmatpush1.bf16.msra.mxu0 %v703
    %733 = vmatprep.subr.bf16.mxu0 0
    %734 = vmatpush1.bf16.msra.mxu0 %v702
    %735 = vmatprep.subr.bf16.mxu0 0
    %736 = vmatpush1.bf16.msra.mxu0 %v701
    %737 = vmatprep.subr.bf16.mxu0 0
    %738 = vmatpush1.bf16.msra.mxu0 %v700
    %739 = vmatprep.subr.bf16.mxu0 0
    %740 = vmatpush1.bf16.msra.mxu0 %v699
    %741 = vmatprep.subr.bf16.mxu0 0
    %742 = vmatpush1.bf16.msra.mxu0 %v698
    %743 = vmatprep.subr.bf16.mxu0 0
    %744 = vmatpush1.bf16.msra.mxu0 %v697
    %745 = vmatprep.subr.bf16.mxu0 0
    %746 = vmatpush2.bf16.msra.mxu0 %v712
    %747 = vmatprep.subr.bf16.mxu0 0
    %748 = vmatpush2.bf16.msra.mxu0 %v711
    %749 = vmatprep.subr.bf16.mxu0 0
    %750 = vmatpush2.bf16.msra.mxu0 %v710
    %751 = vmatprep.subr.bf16.mxu0 0
    %752 = vmatpush2.bf16.msra.mxu0 %v709
    %753 = vmatprep.subr.bf16.mxu0 0
    %754 = vmatpush2.bf16.msra.mxu0 %v708
    %755 = vmatprep.subr.bf16.mxu0 0
    %756 = vmatpush2.bf16.msra.mxu0 %v707
    %757 = vmatprep.subr.bf16.mxu0 0
    %758 = vmatpush2.bf16.msra.mxu0 %v706
    %759 = vmatprep.subr.bf16.mxu0 0
    %760 = vmatpush2.bf16.msra.mxu0 %v705
    %761 = vmatprep.mubr.bf16.mxu0 %v593
    %762 = vmatmul.mubr.bf16.gmra.mxu0 %v592
    %v763 = vpop.f32.mrf.mxu0
    %v764 = vadd.f32 %v631, %v763
    %v765 = vpop.f32.mrf.mxu0
    %v766 = vpop.f32.mrf.mxu0
    %v767 = vadd.f32 %v631, %v766
    %v768 = vpop.f32.mrf.mxu0
    %769 = vdwg.mxu0
    %v770 = vmax.f32 %v764, 0.0
    %v771 = vmax.f32 %v767, 0.0
    %v772 = vld [vmem:[%s9] sm:$0x1]
    %v773 = vpack.c.bf16 %v771, %v770
    %v774 = vld [vmem:[#allocation2] sm:$0x1]
    %776 = vset.pattern.permute.xlu0 0
    %777 = vperm.xlu0 %776, %v774
    %v778 = vpop.permute.xlu0 %777
    %v780 = vlaneseq
    %v781 = vshrl.u32 %v780, 7
    %v782 = vsub.s32 0, %v781
    %v783 = vrot.slane %v778, %v782
    %784 = vmatprep.subr.bf16.mxu0 0
    %785 = vmatpush1.bf16.xpose.msra.mxu0 0
    %786 = vmatprep.subr.bf16.mxu0 0
    %787 = vmatpush1.bf16.xpose.msra.mxu0 0
    %788 = vmatprep.subr.bf16.mxu0 0
    %789 = vmatpush1.bf16.xpose.msra.mxu0 0
    %790 = vmatprep.subr.bf16.mxu0 0
    %791 = vmatpush1.bf16.xpose.msra.mxu0 0
    %792 = vmatprep.subr.bf16.mxu0 0
    %793 = vmatpush1.bf16.xpose.msra.mxu0 0
    %794 = vmatprep.subr.bf16.mxu0 0
    %795 = vmatpush1.bf16.xpose.msra.mxu0 0
    %796 = vmatprep.subr.bf16.mxu0 0
    %797 = vmatpush1.bf16.xpose.msra.mxu0 0
    %798 = vmatprep.subr.bf16.mxu0 0
    %799 = vmatpush1.bf16.xpose.msra.mxu0 %v773
    %800 = vmatprep.subr.bf16.mxu0 0
    %801 = vmatpush2.bf16.xpose.msra.mxu0 0
    %802 = vmatprep.subr.bf16.mxu0 0
    %803 = vmatpush2.bf16.xpose.msra.mxu0 0
    %804 = vmatprep.subr.bf16.mxu0 0
    %805 = vmatpush2.bf16.xpose.msra.mxu0 0
    %806 = vmatprep.subr.bf16.mxu0 0
    %807 = vmatpush2.bf16.xpose.msra.mxu0 0
    %808 = vmatprep.subr.bf16.mxu0 0
    %809 = vmatpush2.bf16.xpose.msra.mxu0 0
    %810 = vmatprep.subr.bf16.mxu0 0
    %811 = vmatpush2.bf16.xpose.msra.mxu0 0
    %812 = vmatprep.subr.bf16.mxu0 0
    %813 = vmatpush2.bf16.xpose.msra.mxu0 0
    %814 = vmatprep.subr.bf16.mxu0 0
    %815 = vmatpush2.bf16.xpose.msra.mxu0 0
    %816 = vmatprep.mubr.bf16.mxu0 0
    %817 = vmatmul.mubr.bf16.gmra.mxu0 %v772
    %v818 = vpop.f32.mrf.mxu0
    %v819 = vadd.f32 %v783, %v818
    %v820 = vpop.f32.mrf.mxu0
    %v821 = vpop.f32.mrf.mxu0
    %v822 = vpop.f32.mrf.mxu0
    %823 = vdwg.mxu0
    %v824 = vxor.u32 %v819, 2147483648
    %v825 = vmul.f32 %v824, 1.442695
    %v826 = vpow.pop %v825
    %v827 = vadd.f32 %v826, 1.0
    %v828 = vrcp.pop %v827
    %v829 = vmul.f32 1.0, %v828
    %vm830 = vcmask 122880
    %831 = vst.msk [vmem:[#allocation12] sm:$0x1] %vm830, %v829
    // Predicated region
    $region66: #{tpu_custom_call.1} parent=1 // pred_check
      _
    $region67: #{tpu_custom_call.1} parent=1 // pred_check_branch
      %833 = sbr.rel (0) target = $region69
    $region68: #{tpu_custom_call.1} parent=1 // pred_region
      %s835 = ssub.s32 16, 16
      %836 = vsyncadd [#allocation5], %s835
      %s838 = sshll.u32 [#allocation12], 4
      %s839 = int_to_ptr.vmem [resolvable:$true] %s838
      %841 = dma.vmem_to_hbm [thread:$0]  %s839, 16, %s11, [#allocation5]
    $region69: #{tpu_custom_call.1} parent=1 // pred_fallthru
      _
    // Predicated region
    $region70: #{tpu_custom_call.1} parent=1 // pred_check
      _
    $region71: #{tpu_custom_call.1} parent=1 // pred_check_branch
      %843 = sbr.rel (0) target = $region73
    $region72: #{tpu_custom_call.1} parent=1 // pred_region
      %844 = dma.done [#allocation5], 16
    $region73: #{tpu_custom_call.1} parent=1 // pred_fallthru
      _
    %845 = vsyncpa [#allocation4], 1
    %846 = vsyncpa [#allocation7], 1
    %847 = vsyncpa [#allocation10], 1
    %848 = vsyncpa [#allocation5], 1

</llo_original>
